<compile_context>
chip_gen: v5e
topology: v5e:2x2
jax: 0.10.0
libtpu: 0.0.40
codegen_flags: <defaults>
</compile_context>

<pallas_src>
import functools
import math

import jax
import jax.numpy as jnp
from jax.experimental import pallas as pl
from jax.experimental.pallas import tpu as pltpu

ACT_DT = jnp.bfloat16
_VMEM_LIMIT = 48 * 1024 * 1024   # above the 16/32 MiB scoped defaults, below v7x's 64 MiB


# ----------------------------------------------------------------------------
# small helpers
# ----------------------------------------------------------------------------
def _round_up(x, m):
    return (x + m - 1) // m * m


def _tile(dim, max_tile, unit):
    """Pick (tile, padded_dim) honoring the (8,128) block constraint."""
    if dim <= max_tile:
        return dim, dim                       # full-dim block is always legal
    for t in range(max_tile, unit - 1, -unit):
        if dim % t == 0:
            return t, dim
    return max_tile, _round_up(dim, max_tile)


def _pad2(a, rows, cols):
    r, c = a.shape
    if r == rows and c == cols:
        return a
    return jnp.pad(a, ((0, rows - r), (0, cols - c)))


def _erf_approx(x):
    """Abramowitz & Stegun 7.1.26 (|err| < 1.5e-7): avoids relying on an erf
    primitive inside the kernel; numerically equivalent to exact erf at f32."""
    a1, a2, a3, a4, a5 = 0.254829592, -0.284496736, 1.421413741, -1.453152027, 1.061405429
    p = 0.3275911
    ax = jnp.abs(x)
    t = 1.0 / (1.0 + p * ax)
    poly = ((((a5 * t + a4) * t + a3) * t + a2) * t + a1) * t
    y = 1.0 - poly * jnp.exp(-ax * ax)
    return jnp.where(x < 0, -y, y)


def _gelu_exact(x):
    return 0.5 * x * (1.0 + _erf_approx(x * 0.7071067811865476))


# ----------------------------------------------------------------------------
# Pallas kernels
# ----------------------------------------------------------------------------
def _mm_kernel(*refs, act, act_in, has_res):
    x_ref, w_ref, b_ref = refs[0], refs[1], refs[2]
    if has_res:
        r_ref, o_ref, acc_ref = refs[3], refs[4], refs[5]
    else:
        r_ref = None
        o_ref, acc_ref = refs[3], refs[4]

    @pl.when(pl.program_id(2) == 0)
    def _():
        acc_ref[...] = jnp.zeros_like(acc_ref)

    x = x_ref[...]
    if act_in == "silu":
        xf = x.astype(jnp.float32)
        x = (xf * jax.nn.sigmoid(xf)).astype(x.dtype)
    acc_ref[...] += jnp.dot(x, w_ref[...], preferred_element_type=jnp.float32)

    @pl.when(pl.program_id(2) == pl.num_programs(2) - 1)
    def _():
        y = acc_ref[...] + b_ref[...].astype(jnp.float32)
        if act == "silu":
            y = y * jax.nn.sigmoid(y)
        if has_res:
            y = y + r_ref[...].astype(jnp.float32)
        o_ref[...] = y.astype(o_ref.dtype)


def _geglu_kernel(x_ref, wa_ref, wb_ref, ba_ref, bb_ref, o_ref, acc_a, acc_b):
    @pl.when(pl.program_id(2) == 0)
    def _():
        acc_a[...] = jnp.zeros_like(acc_a)
        acc_b[...] = jnp.zeros_like(acc_b)

    x = x_ref[...]
    acc_a[...] += jnp.dot(x, wa_ref[...], preferred_element_type=jnp.float32)
    acc_b[...] += jnp.dot(x, wb_ref[...], preferred_element_type=jnp.float32)

    @pl.when(pl.program_id(2) == pl.num_programs(2) - 1)
    def _():
        a = acc_a[...] + ba_ref[...].astype(jnp.float32)
        g = acc_b[...] + bb_ref[...].astype(jnp.float32)
        o_ref[...] = (a * _gelu_exact(g)).astype(o_ref.dtype)


def _conv_kernel(*refs, taps, wp, ns, has_time, has_res):
    x_ref, w_ref, b_ref = refs[0], refs[1], refs[2]
    idx = 3
    t_ref = None
    r_ref = None
    if has_time:
        t_ref = refs[idx]
        idx += 1
    if has_res:
        r_ref = refs[idx]
        idx += 1
    o_ref = refs[idx]

    cout = o_ref.shape[-1]
    acc = jnp.zeros((ns, cout), jnp.float32)
    for t in range(taps * taps):            # static 3x3 (or kxk) window loop
        i, j = divmod(t, taps)
        start = i * wp + j
        slab = x_ref[0, start:start + ns, :]          # (ns, Cin) bf16
        acc = acc + jnp.dot(slab, w_ref[t], preferred_element_type=jnp.float32)
    acc = acc + b_ref[...].astype(jnp.float32)
    if has_time:
        acc = acc + t_ref[0].astype(jnp.float32)
    if has_res:
        acc = acc + r_ref[0].astype(jnp.float32)
    o_ref[0] = acc.astype(o_ref.dtype)


def _group_norm_kernel(x_ref, m_ref, g_ref, b_ref, o_ref, *, eps, silu, inv_n):
    x = x_ref[0].astype(jnp.float32)                   # (HW, C)
    m = m_ref[...]                                     # (C, G) one-hot
    s_c = jnp.sum(x, axis=0, keepdims=True)            # (1, C)
    mean_g = jnp.dot(s_c, m, preferred_element_type=jnp.float32) * inv_n
    mean_c = jax.lax.dot_general(mean_g, m, (((1,), (1,)), ((), ())),
                                 preferred_element_type=jnp.float32)
    xc = x - mean_c
    var_g = jnp.dot(jnp.sum(xc * xc, axis=0, keepdims=True), m,
                    preferred_element_type=jnp.float32) * inv_n
    var_c = jax.lax.dot_general(var_g, m, (((1,), (1,)), ((), ())),
                                preferred_element_type=jnp.float32)
    y = xc * jax.lax.rsqrt(var_c + eps)
    y = y * g_ref[...] + b_ref[...]
    if silu:
        y = y * jax.nn.sigmoid(y)
    o_ref[0] = y.astype(o_ref.dtype)


def _layer_norm_kernel(x_ref, g_ref, b_ref, o_ref, *, eps):
    x = x_ref[...].astype(jnp.float32)
    mean = jnp.mean(x, axis=-1, keepdims=True)
    var = jnp.mean(jnp.square(x - mean), axis=-1, keepdims=True)
    y = (x - mean) * jax.lax.rsqrt(var + eps)
    y = y * g_ref[...] + b_ref[...]
    o_ref[...] = y.astype(o_ref.dtype)


def _flash_kernel(q_ref, k_ref, v_ref, o_ref, m_ref, l_ref, acc_ref, *,
                  scale, kv_len, need_mask):
    ki = pl.program_id(2)

    @pl.when(ki == 0)
    def _():
        m_ref[...] = jnp.full_like(m_ref, -1e30)
        l_ref[...] = jnp.zeros_like(l_ref)
        acc_ref[...] = jnp.zeros_like(acc_ref)

    q = q_ref[0]
    k = k_ref[0]
    v = v_ref[0]
    s = jax.lax.dot_general(q, k, (((1,), (1,)), ((), ())),
                            preferred_element_type=jnp.float32) * scale   # (tq, tk)
    if need_mask:
        tk = s.shape[1]
        col = ki * tk + jax.lax.broadcasted_iota(jnp.int32, (1, tk), 1)
        s = jnp.where(col < kv_len, s, -1e30)

    m_prev = m_ref[...]
    m_new = jnp.maximum(m_prev, jnp.max(s, axis=-1, keepdims=True))
    alpha = jnp.exp(m_prev - m_new)
    p = jnp.exp(s - m_new)
    l_ref[...] = alpha * l_ref[...] + jnp.sum(p, axis=-1, keepdims=True)
    acc_ref[...] = alpha * acc_ref[...] + jnp.dot(
        p.astype(v.dtype), v, preferred_element_type=jnp.float32)
    m_ref[...] = m_new

    @pl.when(ki == pl.num_programs(2) - 1)
    def _():
        o_ref[0] = (acc_ref[...] * pl.reciprocal(l_ref[...], approx=True)
                    ).astype(o_ref.dtype)


# ----------------------------------------------------------------------------
# Pallas wrappers
# ----------------------------------------------------------------------------
@functools.partial(jax.jit, static_argnames=("act", "act_in", "out_dtype"))
def linear(x, w, b, residual=None, *, act=None, act_in=None, out_dtype=ACT_DT):
    """y = act(act_in(x) @ w + b) (+ residual).  x:(M,K), w:(K,N), b:(N,)."""
    M, K = x.shape
    N = w.shape[1]
    tm, Mp = _tile(M, 256, 8)
    tn, Np = _tile(N, 256, 128)
    tk, Kp = _tile(K, 512, 128)

    xb = _pad2(x, Mp, Kp).astype(jnp.bfloat16)
    wb = _pad2(w, Kp, Np).astype(jnp.bfloat16)
    b2 = _pad2(b.reshape(1, N).astype(jnp.float32), 1, Np)

    ins = [xb, wb, b2]
    in_specs = [pl.BlockSpec((tm, tk), lambda i, j, k: (i, k)),
                pl.BlockSpec((tk, tn), lambda i, j, k: (k, j)),
                pl.BlockSpec((1, tn), lambda i, j, k: (0, j))]
    has_res = residual is not None
    if has_res:
        ins.append(_pad2(residual, Mp, Np).astype(ACT_DT))
        in_specs.append(pl.BlockSpec((tm, tn), lambda i, j, k: (i, j)))

    kern = functools.partial(_mm_kernel, act=act, act_in=act_in, has_res=has_res)
    out = pl.pallas_call(
        kern,
        grid_spec=pltpu.PrefetchScalarGridSpec(
            num_scalar_prefetch=0,
            grid=(Mp // tm, Np // tn, Kp // tk),
            in_specs=in_specs,
            out_specs=pl.BlockSpec((tm, tn), lambda i, j, k: (i, j)),
            scratch_shapes=[pltpu.VMEM((tm, tn), jnp.float32)]),
        out_shape=jax.ShapeDtypeStruct((Mp, Np), out_dtype),
        compiler_params=pltpu.CompilerParams(
            dimension_semantics=("parallel", "parallel", "arbitrary"),
            vmem_limit_bytes=_VMEM_LIMIT),
    )(*ins)
    if Mp != M or Np != N:
        out = out[:M, :N]
    return out


@jax.jit
def geglu(x, w, b):
    """GEGLU: split(x @ w + b) -> a * gelu(gate), fused in one kernel pass."""
    M, K = x.shape
    N = w.shape[1] // 2
    tm, Mp = _tile(M, 256, 8)
    tn, Np = _tile(N, 256, 128)
    tk, Kp = _tile(K, 512, 128)

    xb = _pad2(x, Mp, Kp).astype(jnp.bfloat16)
    wa = _pad2(w[:, :N], Kp, Np).astype(jnp.bfloat16)
    wb = _pad2(w[:, N:], Kp, Np).astype(jnp.bfloat16)
    ba = _pad2(b[:N].reshape(1, N).astype(jnp.float32), 1, Np)
    bb = _pad2(b[N:].reshape(1, N).astype(jnp.float32), 1, Np)

    out = pl.pallas_call(
        _geglu_kernel,
        grid_spec=pltpu.PrefetchScalarGridSpec(
            num_scalar_prefetch=0,
            grid=(Mp // tm, Np // tn, Kp // tk),
            in_specs=[pl.BlockSpec((tm, tk), lambda i, j, k: (i, k)),
                      pl.BlockSpec((tk, tn), lambda i, j, k: (k, j)),
                      pl.BlockSpec((tk, tn), lambda i, j, k: (k, j)),
                      pl.BlockSpec((1, tn), lambda i, j, k: (0, j)),
                      pl.BlockSpec((1, tn), lambda i, j, k: (0, j))],
            out_specs=pl.BlockSpec((tm, tn), lambda i, j, k: (i, j)),
            scratch_shapes=[pltpu.VMEM((tm, tn), jnp.float32),
                            pltpu.VMEM((tm, tn), jnp.float32)]),
        out_shape=jax.ShapeDtypeStruct((Mp, Np), ACT_DT),
        compiler_params=pltpu.CompilerParams(
            dimension_semantics=("parallel", "parallel", "arbitrary"),
            vmem_limit_bytes=_VMEM_LIMIT),
    )(xb, wa, wb, ba, bb)
    if Mp != M or Np != N:
        out = out[:M, :N]
    return out


@functools.partial(jax.jit, static_argnames=("k", "stride", "padding"))
def conv2d(x, w, b, *, k, stride=1, padding=0, time=None, residual=None):
    """NHWC conv.  x:(N,H,W,Cin), w:(k,k,Cin,Cout), b:(Cout,).
    time: optional (N,Cout) fused per-channel add; residual: optional fused add."""
    N, H, W, Cin = x.shape
    Cout = w.shape[-1]

    if k == 1 and stride == 1 and padding == 0:          # 1x1 conv == matmul
        xm = x.reshape(N * H * W, Cin)
        rm = residual.reshape(N * H * W, Cout) if residual is not None else None
        y = linear(xm, w.reshape(Cin, Cout), b, rm)
        if time is not None:
            y = y + jnp.repeat(time, H * W, axis=0).astype(y.dtype)
        return y.reshape(N, H, W, Cout)

    Hp, Wp = H + 2 * padding, W + 2 * padding
    Hout = (Hp - k) // stride + 1
    Wout = (Wp - k) // stride + 1

    if stride != 1:
        # TODO(synk): the 3 strided downsample convs still use materialized
        # im2col + the tiled matmul instead of a fused strided-gather kernel.
        xp = jnp.pad(x, ((0, 0), (padding, padding), (padding, padding), (0, 0)))
        cols = [xp[:, i:i + (Hout - 1) * stride + 1:stride,
                   j:j + (Wout - 1) * stride + 1:stride, :]
                for i in range(k) for j in range(k)]
        patches = jnp.concatenate(cols, axis=-1).reshape(N * Hout * Wout, k * k * Cin)
        rm = residual.reshape(N * Hout * Wout, Cout) if residual is not None else None
        y = linear(patches, w.reshape(k * k * Cin, Cout), b, rm)
        if time is not None:
            y = y + jnp.repeat(time, Hout * Wout, axis=0).astype(y.dtype)
        return y.reshape(N, Hout, Wout, Cout)

    # stride-1 fused path: width-flattened slabs, static kxk window loop in-kernel
    S = Hout * Wp                       # extended rows (Wp cols/row, first Wout valid)
    L2 = Hp * Wp + (k - 1)
    xp = jnp.pad(x, ((0, 0), (padding, padding), (padding, padding), (0, 0)))
    x2 = xp.reshape(N, Hp * Wp, Cin)
    if k > 1:
        x2 = jnp.pad(x2, ((0, 0), (0, k - 1), (0, 0)))
    x2 = x2.astype(jnp.bfloat16)

    tco, Cop = _tile(Cout, 256, 128)
    wr = w.reshape(k * k, Cin, Cout)
    if Cop != Cout:
        wr = jnp.pad(wr, ((0, 0), (0, 0), (0, Cop - Cout)))
    wr = wr.astype(jnp.bfloat16)
    b2 = _pad2(b.reshape(1, Cout).astype(jnp.float32), 1, Cop)

    ins = [x2, wr, b2]
    in_specs = [pl.BlockSpec((1, L2, Cin), lambda n, c: (n, 0, 0)),
                pl.BlockSpec((k * k, Cin, tco), lambda n, c: (0, 0, c)),
                pl.BlockSpec((1, tco), lambda n, c: (0, c))]

    has_time = time is not None
    if has_time:
        t3 = time.reshape(N, 1, Cout).astype(jnp.float32)
        if Cop != Cout:
            t3 = jnp.pad(t3, ((0, 0), (0, 0), (0, Cop - Cout)))
        ins.append(t3)
        in_specs.append(pl.BlockSpec((1, 1, tco), lambda n, c: (n, 0, c)))

    has_res = residual is not None
    if has_res:
        r = jnp.pad(residual, ((0, 0), (0, 0), (0, Wp - Wout), (0, Cop - Cout)))
        ins.append(r.reshape(N, S, Cop).astype(ACT_DT))
        in_specs.append(pl.BlockSpec((1, S, tco), lambda n, c: (n, 0, c)))

    kern = functools.partial(_conv_kernel, taps=k, wp=Wp, ns=S,
                             has_time=has_time, has_res=has_res)
    y = pl.pallas_call(
        kern,
        grid_spec=pltpu.PrefetchScalarGridSpec(
            num_scalar_prefetch=0,
            grid=(N, Cop // tco),
            in_specs=in_specs,
            out_specs=pl.BlockSpec((1, S, tco), lambda n, c: (n, 0, c))),
        out_shape=jax.ShapeDtypeStruct((N, S, Cop), ACT_DT),
        compiler_params=pltpu.CompilerParams(
            dimension_semantics=("parallel", "parallel"),
            vmem_limit_bytes=_VMEM_LIMIT),
    )(*ins)
    return y.reshape(N, Hout, Wp, Cop)[:, :, :Wout, :Cout]


@functools.partial(jax.jit, static_argnames=("n_groups", "eps", "silu"))
def group_norm(x, gamma, beta, *, n_groups, eps, silu):
    """x: (N, H, W, C) NHWC; per-(sample, group) statistics via one-hot matmul."""
    N, H, W, C = x.shape
    G = n_groups
    Cg = C // G
    HW = H * W
    x3 = x.reshape(N, HW, C).astype(ACT_DT)
    onehot = (jnp.arange(C)[:, None] // Cg == jnp.arange(G)[None, :]).astype(jnp.float32)
    g2 = gamma.reshape(1, C).astype(jnp.float32)
    b2 = beta.reshape(1, C).astype(jnp.float32)
    kern = functools.partial(_group_norm_kernel, eps=eps, silu=silu,
                             inv_n=1.0 / float(HW * Cg))
    y = pl.pallas_call(
        kern,
        grid_spec=pltpu.PrefetchScalarGridSpec(
            num_scalar_prefetch=0,
            grid=(N,),
            in_specs=[pl.BlockSpec((1, HW, C), lambda n: (n, 0, 0)),
                      pl.BlockSpec((C, G), lambda n: (0, 0)),
                      pl.BlockSpec((1, C), lambda n: (0, 0)),
                      pl.BlockSpec((1, C), lambda n: (0, 0))],
            out_specs=pl.BlockSpec((1, HW, C), lambda n: (n, 0, 0))),
        out_shape=jax.ShapeDtypeStruct((N, HW, C), ACT_DT),
        compiler_params=pltpu.CompilerParams(
            dimension_semantics=("parallel",),
            vmem_limit_bytes=_VMEM_LIMIT),
    )(x3, onehot, g2, b2)
    return y.reshape(N, H, W, C)


@functools.partial(jax.jit, static_argnames=("eps",))
def layer_norm(x2, gamma, beta, *, eps=1e-5):
    """x2: (M, C) token rows; gamma/beta passed untiled as (1, C)."""
    M, C = x2.shape
    tm, Mp = _tile(M, 256, 8)
    xb = _pad2(x2, Mp, C).astype(ACT_DT)
    g2 = gamma.reshape(1, C).astype(jnp.float32)
    b2 = beta.reshape(1, C).astype(jnp.float32)
    kern = functools.partial(_layer_norm_kernel, eps=eps)
    y = pl.pallas_call(
        kern,
        grid_spec=pltpu.PrefetchScalarGridSpec(
            num_scalar_prefetch=0,
            grid=(Mp // tm,),
            in_specs=[pl.BlockSpec((tm, C), lambda i: (i, 0)),
                      pl.BlockSpec((1, C), lambda i: (0, 0)),
                      pl.BlockSpec((1, C), lambda i: (0, 0))],
            out_specs=pl.BlockSpec((tm, C), lambda i: (i, 0))),
        out_shape=jax.ShapeDtypeStruct((Mp, C), ACT_DT),
        compiler_params=pltpu.CompilerParams(
            dimension_semantics=("parallel",),
            vmem_limit_bytes=_VMEM_LIMIT),
    )(xb, g2, b2)
    return y[:M] if Mp != M else y


@functools.partial(jax.jit, static_argnames=("n_head",))
def attention(q, k, v, *, n_head):
    """q: (N, Lq, C); k, v: (N, Lk, C) -> (N*Lq, C).  Flash-style online softmax."""
    N, Lq, C = q.shape
    Lk = k.shape[1]
    Dh = C // n_head
    scale = 1.0 / math.sqrt(Dh)

    def split(t, L):
        return (t.reshape(N, L, n_head, Dh).transpose(0, 2, 1, 3)
                .reshape(N * n_head, L, Dh))

    qh, kh, vh = split(q, Lq), split(k, Lk), split(v, Lk)
    Dhp = _round_up(max(Dh, 128), 128)         # lane-dense head dim
    tq, Lqp = _tile(Lq, 256, 8)
    tk, Lkp = _tile(Lk, 512, 8)

    def pad3(t, Lp):
        L = t.shape[1]
        if L == Lp and Dh == Dhp:
            return t.astype(ACT_DT)
        return jnp.pad(t, ((0, 0), (0, Lp - L), (0, Dhp - Dh))).astype(ACT_DT)

    qp, kp, vp = pad3(qh, Lqp), pad3(kh, Lkp), pad3(vh, Lkp)
    BH = N * n_head
    kern = functools.partial(_flash_kernel, scale=scale, kv_len=Lk,
                             need_mask=(Lkp != Lk))
    out = pl.pallas_call(
        kern,
        grid_spec=pltpu.PrefetchScalarGridSpec(
            num_scalar_prefetch=0,
            grid=(BH, Lqp // tq, Lkp // tk),
            in_specs=[pl.BlockSpec((1, tq, Dhp), lambda b, qi, ki: (b, qi, 0)),
                      pl.BlockSpec((1, tk, Dhp), lambda b, qi, ki: (b, ki, 0)),
                      pl.BlockSpec((1, tk, Dhp), lambda b, qi, ki: (b, ki, 0))],
            out_specs=pl.BlockSpec((1, tq, Dhp), lambda b, qi, ki: (b, qi, 0)),
            scratch_shapes=[pltpu.VMEM((tq, 1), jnp.float32),
                            pltpu.VMEM((tq, 1), jnp.float32),
                            pltpu.VMEM((tq, Dhp), jnp.float32)]),
        out_shape=jax.ShapeDtypeStruct((BH, Lqp, Dhp), ACT_DT),
        compiler_params=pltpu.CompilerParams(
            dimension_semantics=("parallel", "parallel", "arbitrary"),
            vmem_limit_bytes=_VMEM_LIMIT),
    )(qp, kp, vp)
    out = out[:, :Lq, :Dh]
    # TODO(synk): head split/merge still round-trips HBM; a head-packed kernel
    # reading the (L, H*Dh) layout directly would remove these two transposes.
    return (out.reshape(N, n_head, Lq, Dh).transpose(0, 2, 1, 3)
            .reshape(N * Lq, C))


# ----------------------------------------------------------------------------
# Parameter init (deterministic, synthetic)
# ----------------------------------------------------------------------------
class KeyGen:
    def __init__(self, seed):
        self._key = jax.random.PRNGKey(seed)

    def __call__(self):
        self._key, sub = jax.random.split(self._key)
        return sub


def init_linear(kg, din, dout):
    w = jax.random.normal(kg(), (din, dout), jnp.float32) / math.sqrt(din)
    return {"w": w, "b": jnp.zeros((dout,), jnp.float32)}


def init_conv(kg, cin, cout, k):
    w = jax.random.normal(kg(), (k, k, cin, cout), jnp.float32) / math.sqrt(cin * k * k)
    return {"w": w, "b": jnp.zeros((cout,), jnp.float32), "k": k}


def init_norm(c):
    return {"g": jnp.ones((c,), jnp.float32), "b": jnp.zeros((c,), jnp.float32)}


def init_residual_block(kg, cin, cout, n_time):
    p = {"gn1": init_norm(cin),
         "conv1": init_conv(kg, cin, cout, 3),
         "lin_time": init_linear(kg, n_time, cout),
         "gn2": init_norm(cout),
         "conv2": init_conv(kg, cout, cout, 3)}
    if cin != cout:
        p["res"] = init_conv(kg, cin, cout, 1)
    return p


def init_attention_block(kg, n_head, d_head, d_context):
    c = n_head * d_head
    return {"n_head": n_head,
            "gn": init_norm(c),
            "conv_in": init_linear(kg, c, c),            # 1x1 conv == linear
            "ln1": init_norm(c),
            "attn1_in": init_linear(kg, c, 3 * c),       # in_proj_bias=False (bias 0)
            "attn1_out": init_linear(kg, c, c),
            "ln2": init_norm(c),
            "attn2_q": init_linear(kg, c, c),             # bias=False
            "attn2_k": init_linear(kg, d_context, c),     # bias=False
            "attn2_v": init_linear(kg, d_context, c),     # bias=False
            "attn2_out": init_linear(kg, c, c),
            "ln3": init_norm(c),
            "geglu1": init_linear(kg, c, 8 * c),
            "geglu2": init_linear(kg, 4 * c, c),
            "conv_out": init_linear(kg, c, c)}


def init_upsample(kg, c):
    return {"conv": init_conv(kg, c, c, 3)}


def init_diffusion(seed=0, *, base=320, n_head=8, d_context=768, n_groups=32):
    kg = KeyGen(seed)
    c1, c2, c3 = base, 2 * base, 4 * base
    n_time = 4 * base
    d1, d2, d3 = c1 // n_head, c2 // n_head, c3 // n_head

    def res(cin, cout):
        return ("res", init_residual_block(kg, cin, cout, n_time))

    def attn(d):
        return ("attn", init_attention_block(kg, n_head, d, d_context))

    def conv(cin, cout, stride):
        return ("conv", {**init_conv(kg, cin, cout, 3), "stride": stride, "padding": 1})

    def up(c):
        return ("up", init_upsample(kg, c))

    encoders = [
        [conv(4, c1, 1)],
        [res(c1, c1), attn(d1)],
        [res(c1, c1), attn(d1)],
        [conv(c1, c1, 2)],
        [res(c1, c2), attn(d2)],
        [res(c2, c2), attn(d2)],
        [conv(c2, c2, 2)],
        [res(c2, c3), attn(d3)],
        [res(c3, c3), attn(d3)],
        [conv(c3, c3, 2)],
        [res(c3, c3)],
        [res(c3, c3)],
    ]
    bottleneck = [res(c3, c3), attn(d3), res(c3, c3)]
    # TODO(synk): the reference UNET.decoders list is truncated / channel-inconsistent
    # (only 7 entries; entry 6 declared 2560->1280 while the skip concat gives 1920);
    # we use the canonical 12-entry SD decoder stack so skip-connection channel
    # bookkeeping is well defined and the final 320->4 output layer applies.
    decoders = [
        [res(2 * c3, c3)],
        [res(2 * c3, c3)],
        [res(2 * c3, c3), up(c3)],
        [res(2 * c3, c3), attn(d3)],
        [res(2 * c3, c3), attn(d3)],
        [res(c3 + c2, c3), attn(d3), up(c3)],
        [res(c3 + c2, c2), attn(d2)],
        [res(2 * c2, c2), attn(d2)],
        [res(c2 + c1, c2), attn(d2), up(c2)],
        [res(c2 + c1, c1), attn(d1)],
        [res(2 * c1, c1), attn(d1)],
        [res(2 * c1, c1), attn(d1)],
    ]
    return {
        "time_embedding": {"l1": init_linear(kg, base, n_time),
                           "l2": init_linear(kg, n_time, n_time)},
        "unet": {"encoders": encoders, "bottleneck": bottleneck, "decoders": decoders},
        "final": {"gn": init_norm(c1), "conv": init_conv(kg, c1, 4, 3)},
        "n_groups": n_groups,
    }


# ----------------------------------------------------------------------------
# Forward passes (mirroring the PyTorch modules; internal layout is NHWC)
# ----------------------------------------------------------------------------
def time_embedding_fwd(p, t):
    h = linear(t, p["l1"]["w"], p["l1"]["b"], act="silu")
    return linear(h, p["l2"]["w"], p["l2"]["b"])


def residual_block_fwd(p, x, time_emb, n_groups):
    residue = x
    h = group_norm(x, p["gn1"]["g"], p["gn1"]["b"], n_groups=n_groups, eps=1e-5, silu=True)
    # silu(time) fused into the lin_time matmul; its (N, Cout) result is added
    # inside the conv1 epilogue (no separate broadcast-add pass over HBM).
    t = linear(time_emb, p["lin_time"]["w"], p["lin_time"]["b"],
               act_in="silu", out_dtype=jnp.float32)
    h = conv2d(h, p["conv1"]["w"], p["conv1"]["b"], k=3, stride=1, padding=1, time=t)
    if "res" in p:
        residue = conv2d(residue, p["res"]["w"], p["res"]["b"], k=1)
    h = group_norm(h, p["gn2"]["g"], p["gn2"]["b"], n_groups=n_groups, eps=1e-5, silu=True)
    return conv2d(h, p["conv2"]["w"], p["conv2"]["b"], k=3, stride=1, padding=1,
                  residual=residue)


def attention_block_fwd(p, x, context, n_groups):
    n_head = p["n_head"]
    N, H, W, C = x.shape
    L = H * W
    residue_long = x.reshape(N * L, C)

    h = group_norm(x, p["gn"]["g"], p["gn"]["b"], n_groups=n_groups, eps=1e-6, silu=False)
    h = linear(h.reshape(N * L, C), p["conv_in"]["w"], p["conv_in"]["b"])

    # self-attention (+ short residual fused into the output projection)
    res_s = h
    hn = layer_norm(h, p["ln1"]["g"], p["ln1"]["b"])
    qkv = linear(hn, p["attn1_in"]["w"], p["attn1_in"]["b"])
    q, k, v = jnp.split(qkv, 3, axis=-1)
    o = attention(q.reshape(N, L, C), k.reshape(N, L, C), v.reshape(N, L, C),
                  n_head=n_head)
    h = linear(o, p["attn1_out"]["w"], p["attn1_out"]["b"], res_s)

    # cross-attention (+ short residual fused into the output projection)
    res_s = h
    hn = layer_norm(h, p["ln2"]["g"], p["ln2"]["b"])
    Nc, Lc, Dc = context.shape
    ctx2 = context.reshape(Nc * Lc, Dc)
    q = linear(hn, p["attn2_q"]["w"], p["attn2_q"]["b"])
    kk = linear(ctx2, p["attn2_k"]["w"], p["attn2_k"]["b"])
    vv = linear(ctx2, p["attn2_v"]["w"], p["attn2_v"]["b"])
    o = attention(q.reshape(N, L, C), kk.reshape(N, Lc, C), vv.reshape(N, Lc, C),
                  n_head=n_head)
    h = linear(o, p["attn2_out"]["w"], p["attn2_out"]["b"], res_s)

    # GEGLU feed-forward: split/gelu/gate fused into the first matmul, residual
    # fused into the second.
    res_s = h
    hn = layer_norm(h, p["ln3"]["g"], p["ln3"]["b"])
    gx = geglu(hn, p["geglu1"]["w"], p["geglu1"]["b"])
    h = linear(gx, p["geglu2"]["w"], p["geglu2"]["b"], res_s)

    # 1x1 conv out + long residual fused into the matmul epilogue
    h = linear(h, p["conv_out"]["w"], p["conv_out"]["b"], residue_long)
    return h.reshape(N, H, W, C)


def upsample_fwd(p, x):
    # TODO(synk): nearest-neighbor x2 upsample is still materialized via
    # jnp.repeat instead of being fused into the following conv's gather.
    x = jnp.repeat(jnp.repeat(x, 2, axis=1), 2, axis=2)
    return conv2d(x, p["conv"]["w"], p["conv"]["b"], k=3, stride=1, padding=1)


def output_layer_fwd(p, x, n_groups):
    h = group_norm(x, p["gn"]["g"], p["gn"]["b"], n_groups=n_groups, eps=1e-5, silu=True)
    return conv2d(h, p["conv"]["w"], p["conv"]["b"], k=3, stride=1, padding=1)


def switch_sequential_fwd(layers, x, context, time, n_groups):
    for kind, p in layers:
        if kind == "conv":
            x = conv2d(x, p["w"], p["b"], k=p["k"], stride=p["stride"],
                       padding=p["padding"])
        elif kind == "res":
            x = residual_block_fwd(p, x, time, n_groups)
        elif kind == "attn":
            x = attention_block_fwd(p, x, context, n_groups)
        elif kind == "up":
            x = upsample_fwd(p, x)
    return x


def diffusion_fwd(params, latent, context, time):
    n_groups = params["n_groups"]
    t = time_embedding_fwd(params["time_embedding"], time)
    x = jnp.transpose(latent, (0, 2, 3, 1)).astype(ACT_DT)   # NCHW -> NHWC once
    context = context.astype(ACT_DT)
    skips = []
    for layers in params["unet"]["encoders"]:
        x = switch_sequential_fwd(layers, x, context, t, n_groups)
        skips.append(x)
    x = switch_sequential_fwd(params["unet"]["bottleneck"], x, context, t, n_groups)
    for layers in params["unet"]["decoders"]:
        x = jnp.concatenate([x, skips.pop()], axis=-1)       # torch.cat(dim=1) in NHWC
        x = switch_sequential_fwd(layers, x, context, t, n_groups)
    out = output_layer_fwd(params["final"], x, n_groups)
    return jnp.transpose(out, (0, 3, 1, 2)).astype(jnp.float32)   # back to NCHW


# ----------------------------------------------------------------------------
if __name__ == "__main__":
    # Structure-faithful but SMALL instantiation: base channels 320 -> 32
    # (channel stack 32/64/128, time embedding 32 -> 128), d_context 768 -> 64.
    # Block structure, op sequence, eps values, 32 norm groups, 8 attention
    # heads, skip connections and NCHW module boundaries match the reference.
    base, n_head, d_context, n_groups = 32, 8, 64, 32
    params = init_diffusion(seed=0, base=base, n_head=n_head,
                            d_context=d_context, n_groups=n_groups)

    key = jax.random.PRNGKey(0)
    k1, k2, k3 = jax.random.split(key, 3)
    latent = jax.random.normal(k1, (2, 4, 16, 16), jnp.float32)      # NCHW latent
    context = jax.random.normal(k2, (2, 8, d_context), jnp.float32)  # (B, seq, d_ctx)
    time = jax.random.normal(k3, (2, base), jnp.float32)             # (B, n_embed)

    out = diffusion_fwd(params, latent, context, time)
    out = jax.block_until_ready(out)
    assert out.shape == (2, 4, 16, 16), out.shape
    assert bool(jnp.all(jnp.isfinite(out)))
    print("KERNEL_OK")
</pallas_src>

<mosaic_0001>
module attributes {stable_mosaic.version = 11 : i64} {
  func.func @_mm_kernel(%arg0: i32, %arg1: i32, %arg2: i32, %arg3: memref<2x32xbf16, #tpu.memory_space<vmem>>, %arg4: memref<32x128xbf16, #tpu.memory_space<vmem>>, %arg5: memref<1x128xf32, #tpu.memory_space<vmem>>, %arg6: memref<2x128xbf16, #tpu.memory_space<vmem>>, %arg7: memref<2x128xf32, #tpu.memory_space<vmem>>) attributes {dimension_semantics = [#tpu.dimension_semantics<parallel>, #tpu.dimension_semantics<parallel>, #tpu.dimension_semantics<arbitrary>], iteration_bounds = array<i64: 1, 1, 1>, scalar_prefetch = 0 : i64, scratch_operands = 1 : i64, tpu.core_type = #tpu.core_type<tc>, window_params = [{transform_indices = @transform_0, window_bounds = array<i64: 2, 32>}, {transform_indices = @transform_1, window_bounds = array<i64: 32, 128>}, {transform_indices = @transform_2, window_bounds = array<i64: 1, 128>}, {transform_indices = @transform_3, window_bounds = array<i64: 2, 128>}]} {
    %c0_i32 = arith.constant 0 : i32
    %0 = arith.cmpi eq, %arg2, %c0_i32 : i32
    %1 = arith.extui %0 : i1 to i32
    %c0_i32_0 = arith.constant 0 : i32
    %2 = arith.cmpi ne, %1, %c0_i32_0 : i32
    scf.if %2 {
      %cst_10 = arith.constant 0.000000e+00 : f32
      %12 = vector.broadcast %cst_10 : f32 to vector<2x128xf32>
      %c0_11 = arith.constant 0 : index
      %c0_12 = arith.constant 0 : index
      %13 = vector.load %arg7[%c0_11, %c0_12] : memref<2x128xf32, #tpu.memory_space<vmem>>, vector<2x128xf32>
      tpu.vector_store %arg7[%c0_11, %c0_12], %12 {strides = array<i32>} : memref<2x128xf32, #tpu.memory_space<vmem>>, vector<2x128xf32>,
    } else {
    }
    %c0 = arith.constant 0 : index
    %c0_1 = arith.constant 0 : index
    %3 = vector.load %arg3[%c0, %c0_1] : memref<2x32xbf16, #tpu.memory_space<vmem>>, vector<2x32xbf16>
    %c0_2 = arith.constant 0 : index
    %c0_3 = arith.constant 0 : index
    %4 = vector.load %arg7[%c0_2, %c0_3] : memref<2x128xf32, #tpu.memory_space<vmem>>, vector<2x128xf32>
    %c0_4 = arith.constant 0 : index
    %c0_5 = arith.constant 0 : index
    %5 = vector.load %arg4[%c0_4, %c0_5] : memref<32x128xbf16, #tpu.memory_space<vmem>>, vector<32x128xbf16>
    %cst = arith.constant dense<0.000000e+00> : vector<2x128xf32>
    %6 = tpu.matmul %3, %5, %cst {dimension_numbers = #tpu.dot_dimension_numbers<[1], [0], [0], [1], [0, 0, 1, 1], [], []>} : vector<2x32xbf16>, vector<32x128xbf16>, vector<2x128xf32> -> vector<2x128xf32>
    %7 = arith.addf %4, %6 : vector<2x128xf32>
    %c0_6 = arith.constant 0 : index
    %c0_7 = arith.constant 0 : index
    %8 = vector.load %arg7[%c0_6, %c0_7] : memref<2x128xf32, #tpu.memory_space<vmem>>, vector<2x128xf32>
    tpu.vector_store %arg7[%c0_6, %c0_7], %7 {strides = array<i32>} : memref<2x128xf32, #tpu.memory_space<vmem>>, vector<2x128xf32>,
    %c0_i32_8 = arith.constant 0 : i32
    %9 = arith.cmpi eq, %arg2, %c0_i32_8 : i32
    %10 = arith.extui %9 : i1 to i32
    %c0_i32_9 = arith.constant 0 : i32
    %11 = arith.cmpi ne, %10, %c0_i32_9 : i32
    scf.if %11 {
      %c0_10 = arith.constant 0 : index
      %c0_11 = arith.constant 0 : index
      %12 = vector.load %arg7[%c0_10, %c0_11] : memref<2x128xf32, #tpu.memory_space<vmem>>, vector<2x128xf32>
      %c0_12 = arith.constant 0 : index
      %c0_13 = arith.constant 0 : index
      %13 = vector.load %arg5[%c0_12, %c0_13] : memref<1x128xf32, #tpu.memory_space<vmem>>, vector<1x128xf32>
      %14 = vector.broadcast %13 : vector<1x128xf32> to vector<2x128xf32>
      %15 = arith.addf %12, %14 : vector<2x128xf32>
      %16 = arith.negf %15 : vector<2x128xf32>
      %17 = math.exp %16 : vector<2x128xf32>
      %cst_14 = arith.constant 1.000000e+00 : f32
      %18 = vector.broadcast %cst_14 : f32 to vector<2x128xf32>
      %19 = arith.addf %18, %17 : vector<2x128xf32>
      %20 = arith.divf %18, %19 : vector<2x128xf32>
      %21 = arith.mulf %15, %20 : vector<2x128xf32>
      %22 = arith.truncf %21 : vector<2x128xf32> to vector<2x128xbf16>
      %c0_15 = arith.constant 0 : index
      %c0_16 = arith.constant 0 : index
      %23 = vector.load %arg6[%c0_15, %c0_16] : memref<2x128xbf16, #tpu.memory_space<vmem>>, vector<2x128xbf16>
      tpu.vector_store %arg6[%c0_15, %c0_16], %22 {strides = array<i32>} : memref<2x128xbf16, #tpu.memory_space<vmem>>, vector<2x128xbf16>,
    } else {
    }
    return
  }
  func.func @transform_0(%arg0: i32, %arg1: i32, %arg2: i32) -> (i32, i32) {
    %c0_i32 = arith.constant 0 : i32
    return %arg0, %arg2 : i32, i32
  }
  func.func @transform_1(%arg0: i32, %arg1: i32, %arg2: i32) -> (i32, i32) {
    %c0_i32 = arith.constant 0 : i32
    return %arg2, %arg1 : i32, i32
  }
  func.func @transform_2(%arg0: i32, %arg1: i32, %arg2: i32) -> (i32, i32) {
    %c0_i32 = arith.constant 0 : i32
    %c0_i32_0 = arith.constant 0 : i32
    return %c0_i32, %arg1 : i32, i32
  }
  func.func @transform_3(%arg0: i32, %arg1: i32, %arg2: i32) -> (i32, i32) {
    %c0_i32 = arith.constant 0 : i32
    return %arg0, %arg1 : i32, i32
  }
}

</mosaic_0001>

<llo_original>
// kernel: linear.1
$region0: #{linear.1}
  #allocation0 [shape = 'u32[]', space=smem, size = 0x4, offset = 0x4, fixed_abs, tag = 'smem constant byte address 0x4 - core index']
  #allocation1 [shape = 'u32[72,128]{1,0:T(1,128)}', space=vmem, size = 0x9000, scoped, tag = 'internal scratch']
  #allocation2 [shape = 'f32[2,128]{1,0:T(2,128)}', space=vmem, size = 0x400, scoped, tag = 'scratch operand']
  %s0 = inlined_call_operand.vmem [shape: bf16[2,32], index: 0, kind: input, shape index: {}]
  %s1 = inlined_call_operand.vmem [shape: bf16[32,128], index: 1, kind: input, shape index: {}]
  %s2 = inlined_call_operand.vmem [shape: f32[1,128], index: 2, kind: input, shape index: {}]
  %s3 = inlined_call_operand.hbm [shape: bf16[2,128], index: 3, kind: output, shape index: {}]
  %s4 = sld [smem:[#allocation0]]
  $region30: #{linear.1} parent=0
    _
  %s6 = ssub.s32 1, %s4
  %s7 = scalar_select 0, %s6, %s4
  $region1: #{linear.1} parent=0
    #allocation3 [shape = 'u8[512]{0}', space=vmem, size = 0x400, scoped, tag = 'output window, operand 0, single buffered']
    #allocation4 [shape = 's32[1]{0}', space=sflag, size = 0x4, scoped, tag = 'scoped memory for linear.1']
    %8 = vsyncpa [#allocation4], 0
    // Predicated region
    $region2: #{linear.1} parent=1 // pred_check
      _
    $region3: #{linear.1} parent=1 // pred_check_branch
      %10 = sbr.rel (0) target = $region5
    $region4: #{linear.1} parent=1 // pred_region
      _
    $region5: #{linear.1} parent=1 // pred_fallthru
      _
    // Predicated region
    $region6: #{linear.1} parent=1 // pred_check
      _
    $region7: #{linear.1} parent=1 // pred_check_branch
      %12 = sbr.rel (0) target = $region9
    $region8: #{linear.1} parent=1 // pred_region
      _
    $region9: #{linear.1} parent=1 // pred_fallthru
      _
    // Predicated region
    $region10: #{linear.1} parent=1 // pred_check
      _
    $region11: #{linear.1} parent=1 // pred_check_branch
      %14 = sbr.rel (0) target = $region13
    $region12: #{linear.1} parent=1 // pred_region
      _
    $region13: #{linear.1} parent=1 // pred_fallthru
      _
    %p16 = scmp.eq.s32.totalorder 0, 0
    // Predicated region
    $region14: #{linear.1} parent=1 // pred_check
      %p17 = pneg %p16
    $region15: #{linear.1} parent=1 // pred_check_branch
      %19 = sbr.rel (%p17) target = $region17
    $region16: #{linear.1} parent=1 // pred_region
      %20 = vst [vmem:[#allocation2] sm:$0x3] 0.0
    $region17: #{linear.1} parent=1 // pred_fallthru
      _
    %v21 = vld [vmem:[%s0] sm:$0x1]
    %v22 = vld [vmem:[#allocation2] sm:$0x3]
    %v23 = vld [vmem:[%s1] sm:$0xf]
    %v24 = vld [vmem:[%s1 + $0x4] sm:$0xf]
    %v25 = vld [vmem:[%s1 + $0x8] sm:$0xf]
    %v26 = vld [vmem:[%s1 + $0xc] sm:$0xf]
    %v31 = vunpack.c.l.b16 %v23
    %v32 = vunpack.c.l.b16 %v24
    %v33 = vunpack.c.l.b16 %v25
    %v34 = vunpack.c.l.b16 %v26
    %v35 = vpack.c.b16 %v32, %v31
    %v36 = vpack.c.b16 %v34, %v33
    %vm39 = vcmask 261120
    %v41 = vsel %vm39, %v21, 0
    %43 = vmatpush.bf16.msra.mxu0 0
    %44 = vmatpush.bf16.msra.mxu0 0
    %45 = vmatpush.bf16.msra.mxu0 0
    %46 = vmatpush.bf16.msra.mxu0 0
    %47 = vmatpush.bf16.msra.mxu0 0
    %48 = vmatpush.bf16.msra.mxu0 0
    %49 = vmatpush.bf16.msra.mxu0 %v36
    %50 = vmatpush.bf16.msra.mxu0 %v35
    %51 = vmatmul.bf16.gmra.mxu0 %v41
    %v52 = vpop.f32.mrf.mxu0
    %v53 = vadd.f32 0.0, %v52
    %v54 = vpop.f32.mrf.mxu0
    %55 = vdwg.mxu0
    %v56 = vadd.f32 %v22, %v53
    %57 = vst [vmem:[#allocation2] sm:$0x3] %v56
    // Predicated region
    $region18: #{linear.1} parent=1 // pred_check
      %p58 = pneg %p16
    $region19: #{linear.1} parent=1 // pred_check_branch
      %60 = sbr.rel (%p58) target = $region21
    $region20: #{linear.1} parent=1 // pred_region
      %v61 = vld [vmem:[#allocation2] sm:$0x3]
      %v62 = vld [vmem:[%s2] sm:$0x1]
      %v64 = vperm.slane %v62, 0
      %v66 = vadd.f32 %v61, %v64
      %v67 = vxor.u32 %v66, 2147483648
      %v68 = vmul.f32 %v67, 1.442695
      %v69 = vpow.pop %v68
      %v70 = vadd.f32 %v69, 1.0
      %v71 = vrcp.pop %v70
      %v72 = vmul.f32 %v70, %v71
      %v73 = vsub.f32 1.0, %v72
      %v74 = vmul.f32 %v71, %v73
      %v75 = vadd.f32 %v71, %v74
      %vm76 = vweird.f32 %v70
      %vm77 = vweird.f32 %v71
      %vm78 = vmor %vm76, %vm77
      %v79 = vsel %vm78, %v71, %v75
      %v80 = vand.u32 2147483647, %v70
      %vm81 = vcmp.eq.f32.partialorder %v80, 8.507059e+37
      %v82 = vand.u32 %v70, 2147483648
      %v83 = vor.u32 1.1754944e-38, %v82
      %v84 = vsel %vm81, %v83, %v79
      %v85 = vmul.f32 1.0, %v84
      %v86 = vmul.f32 %v66, %v85
      %v87 = vpack.c.bf16 %v86, %v86
      %88 = vst [vmem:[#allocation3] sm:$0x1] %v87
    $region21: #{linear.1} parent=1 // pred_fallthru
      _
    // Predicated region
    $region22: #{linear.1} parent=1 // pred_check
      _
    $region23: #{linear.1} parent=1 // pred_check_branch
      %90 = sbr.rel (0) target = $region25
    $region24: #{linear.1} parent=1 // pred_region
      %92 = vsyncadd [#allocation4], 0
      %s94 = sshll.u32 [#allocation3], 4
      %s95 = int_to_ptr.vmem [resolvable:$true] %s94
      %s96 = sshll.u32 %s3, 4
      %s97 = int_to_ptr.hbm [resolvable:$true] %s96
      %99 = dma.vmem_to_hbm [thread:$0]  %s95, 16, %s97, [#allocation4]
    $region25: #{linear.1} parent=1 // pred_fallthru
      _
    // Predicated region
    $region26: #{linear.1} parent=1 // pred_check
      _
    $region27: #{linear.1} parent=1 // pred_check_branch
      %101 = sbr.rel (0) target = $region29
    $region28: #{linear.1} parent=1 // pred_region
      %103 = dma.done [#allocation4], 16
    $region29: #{linear.1} parent=1 // pred_fallthru
      _
    %104 = vsyncpa [#allocation4], 1

</llo_original>
